<compile_context>
chip_gen: v7x
topology: tpu7x:2x2x1
jax: 0.10.0
libtpu: 0.0.40
codegen_flags: <defaults>
</compile_context>

<pallas_src>
import jax
import jax.numpy as jnp
from jax.experimental import pallas as pl
from jax.experimental.pallas import tpu as pltpu

EPSILON = 1e-10
NEG_INF_BIAS = -1e9
_MIB = 1024 * 1024


def discriminator_kernel(mask_ref, hidden_ref, wT_ref, b_ref, out_ref,
                         acc_ref, cnt_ref):
    # mask_ref:   (bt, tt, 1)   f32        token mask tile (T on sublanes, like hidden)
    # hidden_ref: (bt, tt, E)   bf16/f32   encoder hidden tile (streamed)
    # wT_ref:     (E, C_pad)    f32        classifier weight, pre-transposed + padded
    # b_ref:      (1, C_pad)    f32        classifier bias (pad columns = -1e9)
    # out_ref:    (bt, C_pad)   f32        log-probs tile
    # acc_ref:    (bt, E)       f32        running masked sum over T
    # cnt_ref:    (bt, 1)       f32        running token count over T
    j = pl.program_id(1)

    @pl.when(j == 0)
    def _init():
        acc_ref[...] = jnp.zeros_like(acc_ref)
        cnt_ref[...] = jnp.zeros_like(cnt_ref)

    mask = mask_ref[...]                                   # (bt, tt, 1)
    hidden = hidden_ref[...].astype(jnp.float32)           # (bt, tt, E), f32 math
    # Hot loop: one mul + one accumulate per element.  The mask broadcast is
    # pure lane replication (its T dim sits on sublanes exactly like hidden's),
    # so no XLU relayout shows up on the critical path.
    acc_ref[...] += jnp.sum(hidden * mask, axis=1)         # (bt, E)
    cnt_ref[...] += jnp.sum(mask, axis=1)                  # (bt, 1)

    @pl.when(j == pl.num_programs(1) - 1)
    def _finalize():
        # Exact division: runs once per B tile, completely off the hot loop,
        # so approx-reciprocal would buy nothing and only add error.
        avg_hidden = acc_ref[...] / (cnt_ref[...] + EPSILON)            # (bt, E)
        logits = jnp.dot(avg_hidden, wT_ref[...],
                         preferred_element_type=jnp.float32) + b_ref[...]  # (bt, C_pad)
        # log_softmax; padded class columns carry bias -1e9 -> exp underflows
        # to 0, so the normalizer only covers the real classes.
        m = jnp.max(logits, axis=-1, keepdims=True)
        lse = m + jnp.log(jnp.sum(jnp.exp(logits - m), axis=-1, keepdims=True))
        out_ref[...] = logits - lse


def _lane_pad(n):
    """Pad a trailing (lane) dim to a whole number of 128-lane vregs."""
    return ((n + 127) // 128) * 128


def _vmem_footprint_bytes(bt, tt, E, C_pad, hid_itemsize):
    """What one grid step actually occupies in VMEM, including layout padding."""
    E_l = _lane_pad(E)
    hidden = 2 * bt * tt * E_l * hid_itemsize      # double-buffered hidden stream
    mask = 2 * bt * tt * 128 * 4                   # (bt,tt,1) f32: lane dim padded to 128
    w = ((E + 7) // 8) * 8 * C_pad * 4             # single-buffered (pl.Buffered(1))
    bias = 8 * C_pad * 4                           # single-buffered, sublane-padded
    out = 2 * bt * C_pad * 4                       # output block
    scratch = bt * E_l * 4 + bt * 128 * 4          # acc + lane-padded count
    return hidden + mask + w + bias + out + scratch


def _vmem_limit_bytes():
    """Per-generation scoped-VMEM request (v5e/v6e: 64 MiB, v7x: ~48 MiB)."""
    try:
        cap = int(pltpu.get_tpu_info().vmem_capacity_bytes)
    except Exception:
        cap = 64 * _MIB                            # conservative (v7x per-core)
    return max(32 * _MIB, min(64 * _MIB, cap - 16 * _MIB))


def _pick_tiles(B_pad, T_pad, E, C_pad, hid_itemsize, vmem_budget,
                max_hidden_tile=8 * _MIB):
    """Pick (bt, tt): biggest tiles that fit the *accounted* VMEM budget."""
    tt_mult = max(8, 32 // hid_itemsize)           # f32: 8, bf16: 16, int8/fp8: 32

    def fits(bt_, tt_):
        return (bt_ * tt_ * _lane_pad(E) * hid_itemsize <= max_hidden_tile
                and _vmem_footprint_bytes(bt_, tt_, E, C_pad, hid_itemsize)
                <= vmem_budget)

    # Batch tile: grow past 8 only when the whole (padded) sequence fits per
    # step, and keep >= 2 B grid steps when possible (both v7x TensorCores).
    bt = 8
    min_b_steps = 2 if B_pad >= 16 else 1
    while (B_pad % (2 * bt) == 0 and B_pad // (2 * bt) >= min_b_steps
           and fits(2 * bt, T_pad)):
        bt *= 2

    # Sequence tile: largest divisor of T_pad (multiple of tt_mult) that fits.
    tt = tt_mult
    for cand in range(tt_mult, T_pad + 1, tt_mult):
        if T_pad % cand == 0 and fits(bt, cand):
            tt = cand
    return bt, tt


def discriminator_forward(x, hidden, w, b, *, bt=None, tt=None):
    """x: (B, T) int tokens, hidden: (B, T, E) encoder output (feed bf16 for ~2x
    less HBM traffic -- the kernel is bandwidth bound), w: (C, E), b: (C,)
    -> (B, C) log-probs.  Accumulation is always f32 regardless of stream dtype."""
    B, T = x.shape
    E = hidden.shape[-1]
    C = w.shape[0]
    C_pad = max(128, ((C + 127) // 128) * 128)
    itemsize = jnp.dtype(hidden.dtype).itemsize
    tt_mult = max(8, 32 // itemsize)

    # Pad batch to a sublane multiple and the sequence to the dtype's packing
    # multiple.  Padded tokens are 0 => mask 0 => they do not affect the sums.
    # (Tiny batches are padded only to 8: padding further just to create a
    #  second v7x TC step would cost more HBM bytes than the idle core saves.)
    B_pad = ((B + 7) // 8) * 8
    T_pad = ((T + tt_mult - 1) // tt_mult) * tt_mult
    if (B_pad, T_pad) != (B, T):
        x = jnp.pad(x, ((0, B_pad - B), (0, T_pad - T)))
        hidden = jnp.pad(hidden, ((0, B_pad - B), (0, T_pad - T), (0, 0)))

    vmem_limit = _vmem_limit_bytes()
    auto_bt, auto_tt = _pick_tiles(B_pad, T_pad, E, C_pad, itemsize,
                                   vmem_budget=vmem_limit - 4 * _MIB)
    bt = auto_bt if bt is None else bt
    tt = auto_tt if tt is None else tt
    assert B_pad % bt == 0 and T_pad % tt == 0, (bt, tt, B_pad, T_pad)

    # Mask precomputed as f32 (B, T, 1): T on sublanes, matching hidden's layout,
    # so the in-kernel broadcast is pure lane replication (no XLU relayout).
    mask = (x != 0).astype(jnp.float32)[:, :, None]

    # Classifier params: pre-transposed weight, class dim padded to a full lane
    # width; padded bias columns get -1e9 so they vanish in log_softmax.
    wT = jnp.zeros((E, C_pad), jnp.float32).at[:, :C].set(
        jnp.asarray(w, jnp.float32).T)
    b_pad = jnp.full((1, C_pad), NEG_INF_BIAS, jnp.float32).at[0, :C].set(
        jnp.asarray(b, jnp.float32))

    grid = (B_pad // bt, T_pad // tt)

    out_pad = pl.pallas_call(
        discriminator_kernel,
        out_shape=jax.ShapeDtypeStruct((B_pad, C_pad), jnp.float32),
        grid_spec=pltpu.PrefetchScalarGridSpec(
            num_scalar_prefetch=0,
            grid=grid,
            in_specs=[
                pl.BlockSpec((bt, tt, 1), lambda i, j: (i, j, 0)),    # mask
                pl.BlockSpec((bt, tt, E), lambda i, j: (i, j, 0)),    # hidden (streamed)
                pl.BlockSpec((E, C_pad), lambda i, j: (0, 0),
                             pipeline_mode=pl.Buffered(1)),           # W^T (resident)
                pl.BlockSpec((1, C_pad), lambda i, j: (0, 0),
                             pipeline_mode=pl.Buffered(1)),           # bias (resident)
            ],
            out_specs=pl.BlockSpec((bt, C_pad), lambda i, j: (i, 0)),
            scratch_shapes=[
                pltpu.VMEM((bt, E), jnp.float32),   # masked-sum accumulator
                pltpu.VMEM((bt, 1), jnp.float32),   # token-count accumulator
            ],
        ),
        compiler_params=pltpu.CompilerParams(
            dimension_semantics=("parallel", "arbitrary"),
            vmem_limit_bytes=vmem_limit,
        ),
    )(mask, hidden, wT, b_pad)

    return out_pad[:B, :C]


def reference_forward(x, hidden, w, b):
    mask = (x != 0).astype(jnp.float32)[:, :, None]
    mask = jnp.broadcast_to(mask, hidden.shape)
    masked_hidden = hidden.astype(jnp.float32) * mask
    avg_hidden = jnp.sum(masked_hidden, axis=1) / (jnp.sum(mask, axis=1) + EPSILON)
    logits = avg_hidden @ jnp.asarray(w, jnp.float32).T + jnp.asarray(b, jnp.float32)
    return jax.nn.log_softmax(logits, axis=-1)


if __name__ == "__main__":
    # Small shapes consistent with the module, sized so both grid axes are
    # exercised (B: 16 -> 2 parallel steps of 8; T: 32 -> 2 reduction steps of
    # 16 with the bf16 sublane-packing tile multiple).
    B, T, E, C, VOCAB = 16, 32, 64, 4, 50

    key = jax.random.PRNGKey(0)
    k_emb, k_tok, k_len, k_w, k_b = jax.random.split(key, 5)

    # Deterministic synthetic "encoder": embedding-table lookup (stands in for
    # GPT2), emitting bf16 hidden states -- the recommended streaming dtype.
    emb_table = jax.random.normal(k_emb, (VOCAB, E), dtype=jnp.float32) * 0.02
    x = jax.random.randint(k_tok, (B, T), 0, VOCAB, dtype=jnp.int32)
    # Right-pad each row with token id 0 so the mask actually matters.
    lengths = jax.random.randint(k_len, (B,), 4, T + 1, dtype=jnp.int32)
    x = jnp.where(jnp.arange(T)[None, :] < lengths[:, None], x, 0)
    hidden = jnp.take(emb_table, x, axis=0).astype(jnp.bfloat16)     # (B, T, E)

    # ClassificationHead parameters (Linear(E -> C)), deterministic init.
    w = jax.random.normal(k_w, (C, E), dtype=jnp.float32) / jnp.sqrt(E)
    b = jax.random.normal(k_b, (C,), dtype=jnp.float32) * 0.01

    # tt=16 override exercises the multi-step T reduction; bt/tt are otherwise
    # auto-derived from the per-generation VMEM budget.
    out = discriminator_forward(x, hidden, w, b, tt=16)
    out = jax.block_until_ready(out)

    ref = reference_forward(x, hidden, w, b)
    assert out.shape == (B, C)
    # Exact division + identical bf16 hidden on both paths -> tight tolerance.
    assert bool(jnp.allclose(out, ref, atol=1e-4, rtol=1e-4)), (out, ref)

    print("KERNEL_OK")
</pallas_src>

<mosaic_0001>
module attributes {stable_mosaic.version = 11 : i64} {
  func.func @discriminator_kernel(%arg0: i32, %arg1: i32, %arg2: memref<8x16x1xf32, #tpu.memory_space<vmem>>, %arg3: memref<8x16x64xbf16, #tpu.memory_space<vmem>>, %arg4: memref<64x128xf32, #tpu.memory_space<vmem>>, %arg5: memref<1x128xf32, #tpu.memory_space<vmem>>, %arg6: memref<8x128xf32, #tpu.memory_space<vmem>>, %arg7: memref<8x64xf32, #tpu.memory_space<vmem>>, %arg8: memref<8x1xf32, #tpu.memory_space<vmem>>) attributes {dimension_semantics = [#tpu.dimension_semantics<parallel>, #tpu.dimension_semantics<arbitrary>], iteration_bounds = array<i64: 2, 2>, scalar_prefetch = 0 : i64, scratch_operands = 2 : i64, tpu.core_type = #tpu.core_type<tc>, window_params = [{transform_indices = @transform_0, window_bounds = array<i64: 8, 16, 1>}, {transform_indices = @transform_1, window_bounds = array<i64: 8, 16, 64>}, {pipeline_mode = #tpu.pipeline_mode<synchronous>, transform_indices = @transform_2, window_bounds = array<i64: 64, 128>}, {pipeline_mode = #tpu.pipeline_mode<synchronous>, transform_indices = @transform_3, window_bounds = array<i64: 1, 128>}, {transform_indices = @transform_4, window_bounds = array<i64: 8, 128>}]} {
    %c0_i32 = arith.constant 0 : i32
    %0 = arith.cmpi eq, %arg1, %c0_i32 : i32
    %1 = arith.extui %0 : i1 to i32
    %c0_i32_0 = arith.constant 0 : i32
    %2 = arith.cmpi ne, %1, %c0_i32_0 : i32
    scf.if %2 {
      %cst_16 = arith.constant 0.000000e+00 : f32
      %19 = vector.broadcast %cst_16 : f32 to vector<8x64xf32>
      %c0_17 = arith.constant 0 : index
      %c0_18 = arith.constant 0 : index
      %20 = vector.load %arg7[%c0_17, %c0_18] : memref<8x64xf32, #tpu.memory_space<vmem>>, vector<8x64xf32>
      tpu.vector_store %arg7[%c0_17, %c0_18], %19 {strides = array<i32>} : memref<8x64xf32, #tpu.memory_space<vmem>>, vector<8x64xf32>,
      %cst_19 = arith.constant 0.000000e+00 : f32
      %21 = vector.broadcast %cst_19 : f32 to vector<8x1xf32>
      %c0_20 = arith.constant 0 : index
      %c0_21 = arith.constant 0 : index
      %22 = vector.load %arg8[%c0_20, %c0_21] : memref<8x1xf32, #tpu.memory_space<vmem>>, vector<8x1xf32>
      tpu.vector_store %arg8[%c0_20, %c0_21], %21 {strides = array<i32>} : memref<8x1xf32, #tpu.memory_space<vmem>>, vector<8x1xf32>,
    } else {
    }
    %c0 = arith.constant 0 : index
    %c0_1 = arith.constant 0 : index
    %c0_2 = arith.constant 0 : index
    %3 = vector.load %arg2[%c0, %c0_1, %c0_2] : memref<8x16x1xf32, #tpu.memory_space<vmem>>, vector<8x16x1xf32>
    %c0_3 = arith.constant 0 : index
    %c0_4 = arith.constant 0 : index
    %c0_5 = arith.constant 0 : index
    %4 = vector.load %arg3[%c0_3, %c0_4, %c0_5] : memref<8x16x64xbf16, #tpu.memory_space<vmem>>, vector<8x16x64xbf16>
    %5 = arith.extf %4 : vector<8x16x64xbf16> to vector<8x16x64xf32>
    %c0_6 = arith.constant 0 : index
    %c0_7 = arith.constant 0 : index
    %6 = vector.load %arg7[%c0_6, %c0_7] : memref<8x64xf32, #tpu.memory_space<vmem>>, vector<8x64xf32>
    %7 = vector.broadcast %3 : vector<8x16x1xf32> to vector<8x16x64xf32>
    %8 = arith.mulf %5, %7 : vector<8x16x64xf32>
    %cst = arith.constant dense<0.000000e+00> : vector<8x64xf32>
    %9 = vector.multi_reduction <add>, %8, %cst [1] : vector<8x16x64xf32> to vector<8x64xf32>
    %10 = arith.addf %6, %9 : vector<8x64xf32>
    %c0_8 = arith.constant 0 : index
    %c0_9 = arith.constant 0 : index
    %11 = vector.load %arg7[%c0_8, %c0_9] : memref<8x64xf32, #tpu.memory_space<vmem>>, vector<8x64xf32>
    tpu.vector_store %arg7[%c0_8, %c0_9], %10 {strides = array<i32>} : memref<8x64xf32, #tpu.memory_space<vmem>>, vector<8x64xf32>,
    %c0_10 = arith.constant 0 : index
    %c0_11 = arith.constant 0 : index
    %12 = vector.load %arg8[%c0_10, %c0_11] : memref<8x1xf32, #tpu.memory_space<vmem>>, vector<8x1xf32>
    %cst_12 = arith.constant dense<0.000000e+00> : vector<8x1xf32>
    %13 = vector.multi_reduction <add>, %3, %cst_12 [1] : vector<8x16x1xf32> to vector<8x1xf32>
    %14 = arith.addf %12, %13 : vector<8x1xf32>
    %c0_13 = arith.constant 0 : index
    %c0_14 = arith.constant 0 : index
    %15 = vector.load %arg8[%c0_13, %c0_14] : memref<8x1xf32, #tpu.memory_space<vmem>>, vector<8x1xf32>
    tpu.vector_store %arg8[%c0_13, %c0_14], %14 {strides = array<i32>} : memref<8x1xf32, #tpu.memory_space<vmem>>, vector<8x1xf32>,
    %c1_i32 = arith.constant 1 : i32
    %16 = arith.cmpi eq, %arg1, %c1_i32 : i32
    %17 = arith.extui %16 : i1 to i32
    %c0_i32_15 = arith.constant 0 : i32
    %18 = arith.cmpi ne, %17, %c0_i32_15 : i32
    scf.if %18 {
      %c0_16 = arith.constant 0 : index
      %c0_17 = arith.constant 0 : index
      %19 = vector.load %arg7[%c0_16, %c0_17] : memref<8x64xf32, #tpu.memory_space<vmem>>, vector<8x64xf32>
      %c0_18 = arith.constant 0 : index
      %c0_19 = arith.constant 0 : index
      %20 = vector.load %arg8[%c0_18, %c0_19] : memref<8x1xf32, #tpu.memory_space<vmem>>, vector<8x1xf32>
      %cst_20 = arith.constant 1.000000e-10 : f32
      %21 = vector.broadcast %cst_20 : f32 to vector<8x1xf32>
      %22 = arith.addf %20, %21 : vector<8x1xf32>
      %23 = vector.broadcast %22 : vector<8x1xf32> to vector<8x64xf32>
      %24 = arith.divf %19, %23 : vector<8x64xf32>
      %c0_21 = arith.constant 0 : index
      %c0_22 = arith.constant 0 : index
      %25 = vector.load %arg4[%c0_21, %c0_22] : memref<64x128xf32, #tpu.memory_space<vmem>>, vector<64x128xf32>
      %cst_23 = arith.constant dense<0.000000e+00> : vector<8x128xf32>
      %26 = tpu.matmul %24, %25, %cst_23 {dimension_numbers = #tpu.dot_dimension_numbers<[1], [0], [0], [1], [0, 0, 1, 1], [], []>} : vector<8x64xf32>, vector<64x128xf32>, vector<8x128xf32> -> vector<8x128xf32>
      %c0_24 = arith.constant 0 : index
      %c0_25 = arith.constant 0 : index
      %27 = vector.load %arg5[%c0_24, %c0_25] : memref<1x128xf32, #tpu.memory_space<vmem>>, vector<1x128xf32>
      %28 = vector.broadcast %27 : vector<1x128xf32> to vector<8x128xf32>
      %29 = arith.addf %26, %28 : vector<8x128xf32>
      %cst_26 = arith.constant dense<0xFF800000> : vector<8xf32>
      %30 = vector.multi_reduction <maximumf>, %29, %cst_26 [1] : vector<8x128xf32> to vector<8xf32>
      %31 = vector.shape_cast %30 : vector<8xf32> to vector<8x1xf32>
      %32 = vector.broadcast %31 : vector<8x1xf32> to vector<8x128xf32>
      %33 = arith.subf %29, %32 : vector<8x128xf32>
      %34 = math.exp %33 : vector<8x128xf32>
      %cst_27 = arith.constant dense<0.000000e+00> : vector<8xf32>
      %35 = vector.multi_reduction <add>, %34, %cst_27 [1] : vector<8x128xf32> to vector<8xf32>
      %36 = vector.shape_cast %35 : vector<8xf32> to vector<8x1xf32>
      %37 = math.log %36 : vector<8x1xf32>
      %38 = arith.addf %31, %37 : vector<8x1xf32>
      %39 = vector.broadcast %38 : vector<8x1xf32> to vector<8x128xf32>
      %40 = arith.subf %29, %39 : vector<8x128xf32>
      %c0_28 = arith.constant 0 : index
      %c0_29 = arith.constant 0 : index
      %41 = vector.load %arg6[%c0_28, %c0_29] : memref<8x128xf32, #tpu.memory_space<vmem>>, vector<8x128xf32>
      tpu.vector_store %arg6[%c0_28, %c0_29], %40 {strides = array<i32>} : memref<8x128xf32, #tpu.memory_space<vmem>>, vector<8x128xf32>,
    } else {
    }
    return
  }
  func.func @transform_0(%arg0: i32, %arg1: i32) -> (i32, i32, i32) {
    %c0_i32 = arith.constant 0 : i32
    %c0_i32_0 = arith.constant 0 : i32
    return %arg0, %arg1, %c0_i32 : i32, i32, i32
  }
  func.func @transform_1(%arg0: i32, %arg1: i32) -> (i32, i32, i32) {
    %c0_i32 = arith.constant 0 : i32
    %c0_i32_0 = arith.constant 0 : i32
    return %arg0, %arg1, %c0_i32 : i32, i32, i32
  }
  func.func @transform_2(%arg0: i32, %arg1: i32) -> (i32, i32) {
    %c0_i32 = arith.constant 0 : i32
    %c0_i32_0 = arith.constant 0 : i32
    %c0_i32_1 = arith.constant 0 : i32
    return %c0_i32, %c0_i32_0 : i32, i32
  }
  func.func @transform_3(%arg0: i32, %arg1: i32) -> (i32, i32) {
    %c0_i32 = arith.constant 0 : i32
    %c0_i32_0 = arith.constant 0 : i32
    %c0_i32_1 = arith.constant 0 : i32
    return %c0_i32, %c0_i32_0 : i32, i32
  }
  func.func @transform_4(%arg0: i32, %arg1: i32) -> (i32, i32) {
    %c0_i32 = arith.constant 0 : i32
    %c0_i32_0 = arith.constant 0 : i32
    return %arg0, %c0_i32 : i32, i32
  }
}

</mosaic_0001>

<llo_original>
// kernel: tpu_custom_call.1
$region0: #{tpu_custom_call.1}
  #allocation0 [shape = 'u32[]', space=smem, size = 0x4, offset = 0x4, fixed_abs, tag = 'smem constant byte address 0x4 - core index']
  #allocation1 [shape = 'u32[144,128]{1,0:T(1,128)}', space=vmem, size = 0x12000, scoped, tag = 'internal scratch']
  #allocation2 [shape = 'f32[8,64]{1,0:T(8,128)}', space=vmem, size = 0x1000, scoped, tag = 'scratch operand']
  #allocation3 [shape = 'f32[8,1]{1,0:T(8,128)}', space=vmem, size = 0x1000, scoped, tag = 'scratch operand']
  %s0 = inlined_call_operand.vmem [shape: f32[16,32,1], index: 0, kind: input, shape index: {}]
  %s1 = inlined_call_operand.vmem [shape: bf16[16,32,64], index: 1, kind: input, shape index: {}]
  %s2 = inlined_call_operand.vmem [shape: f32[64,128], index: 2, kind: input, shape index: {}]
  %s3 = inlined_call_operand.vmem [shape: f32[1,128], index: 3, kind: input, shape index: {}]
  %s4 = inlined_call_operand.hbm [shape: f32[16,128], index: 4, kind: output, shape index: {}]
  %s5 = sld [smem:[#allocation0]]
  $region136: #{tpu_custom_call.1} parent=0
    _
  %s7 = ssub.s32 1, %s5
  %s8 = scalar_select 0, %s7, %s5
  $region1: #{tpu_custom_call.1} parent=0
    #allocation4 [shape = 'u8[131072]{0}', space=vmem, size = 0x20000, scoped, tag = 'input window, operand 0']
    #allocation5 [shape = 'u8[65536]{0}', space=vmem, size = 0x10000, scoped, tag = 'input window, operand 1']
    #allocation6 [shape = 'u8[8192]{0}', space=vmem, size = 0x2000, scoped, tag = 'output window, operand 0']
    #allocation7 [shape = 's32[2]{0}', space=sflag, size = 0x8, scoped, tag = 'scoped memory for tpu_custom_call.1']
    %9 = vsyncpa [#allocation7], 0
    %s10 = scalar_lea.sflag [#allocation7], 1
    %11 = vsyncpa %s10, 0
    loop: start=0, step=1, limit=6
    $region2: #{tpu_custom_call.1} parent=1 // loop_pre_header
      _
    $region3: #{tpu_custom_call.1} parent=1 // loop_header
      %s13 = sphi 0, %s17
      %p14 = scmp.ge.s32.totalorder %s13, 6
      %s20 = sphi 0, %s32
      %s21 = sphi 0, %s28
      %s22 = sphi 0, %s20
      %s23 = sphi 0, %s21
      %s24 = sphi 0, %s22
      %s25 = sphi 0, %s23
      %s37 = sphi 0, %s39
      %s40 = sphi 0, %s37
      %s41 = sphi 0, %s40
      %s57 = sphi 0, %s41
      %s65 = sphi 0, %s67
      %s68 = sphi 0, %s65
      %s69 = sphi 0, %s68
      %s85 = sphi 0, %s69
      %s89 = sphi 0, %s89
      %s91 = sphi 0, %s89
      %s92 = sphi 0, %s91
      %s106 = sphi 0, %s92
      %s110 = sphi 0, %s110
      %s112 = sphi 0, %s110
      %s113 = sphi 0, %s112
      %s127 = sphi 0, %s113
      %s133 = sphi 0, %s135
      %s136 = sphi 0, %s133
      %s137 = sphi 0, %s136
      %s153 = sphi 0, %s137
    $region4: #{tpu_custom_call.1} parent=1 // loop_header_branch
      %16 = sbr.rel (%p14) target = $region8
    $region5: #{tpu_custom_call.1} parent=1 // loop_body
      %s18 = ssub.s32 %s13, 1
      %s19 = ssub.s32 %s13, 2
      %s26 = sadd.s32 1, %s21
      %p27 = scmp.ge.s32.totalorder %s26, 2
      %s28 = scalar_select %p27, 0, %s26
      %s29 = sadd.s32 1, %s20
      %s30 = scalar_select %p27, %s29, %s20
      %p31 = scmp.ge.s32.totalorder %s30, 2
      %s32 = scalar_select %p31, 0, %s30
      %s33 = ssub.s32 %s20, %s32
      %s34 = ssub.s32 %s21, %s28
      %s35 = sor.u32 %s33, %s34
      %p36 = scmp.eq.s32.totalorder %s35, 0
      %s38 = sadd.s32 %s37, 1
      %s39 = scalar_select %p36, %s37, %s38
      %p42 = pneg %p36
      %p43 = scmp.eq.s32.totalorder %s13, 3
      %p44 = por %p42, %p43
      %p45 = scmp.ne.s32.totalorder %s37, %s40
      %p46 = scmp.eq.s32.totalorder %s13, 0
      %p47 = por %p45, %p46
      %p48 = scmp.ne.s32.totalorder %s37, %s40
      %p49 = scmp.eq.s32.totalorder %s18, 3
      %p50 = por %p48, %p49
      %p51 = scmp.ne.s32.totalorder %s40, %s41
      %p52 = scmp.eq.s32.totalorder %s18, 0
      %p53 = por %p51, %p52
      %p54 = scmp.ne.s32.totalorder %s40, %s41
      %p55 = scmp.eq.s32.totalorder %s19, 3
      %p56 = por %p54, %p55
      %p58 = scmp.ne.s32.totalorder %s41, %s57
      %p59 = scmp.eq.s32.totalorder %s19, 0
      %p60 = por %p58, %p59
      %s61 = ssub.s32 %s20, %s32
      %s62 = ssub.s32 %s21, %s28
      %s63 = sor.u32 %s61, %s62
      %p64 = scmp.eq.s32.totalorder %s63, 0
      %s66 = sadd.s32 %s65, 1
      %s67 = scalar_select %p64, %s65, %s66
      %p70 = pneg %p64
      %p71 = scmp.eq.s32.totalorder %s13, 3
      %p72 = por %p70, %p71
      %p73 = scmp.ne.s32.totalorder %s65, %s68
      %p74 = scmp.eq.s32.totalorder %s13, 0
      %p75 = por %p73, %p74
      %p76 = scmp.ne.s32.totalorder %s65, %s68
      %p77 = scmp.eq.s32.totalorder %s18, 3
      %p78 = por %p76, %p77
      %p79 = scmp.ne.s32.totalorder %s68, %s69
      %p80 = scmp.eq.s32.totalorder %s18, 0
      %p81 = por %p79, %p80
      %p82 = scmp.ne.s32.totalorder %s68, %s69
      %p83 = scmp.eq.s32.totalorder %s19, 3
      %p84 = por %p82, %p83
      %p86 = scmp.ne.s32.totalorder %s69, %s85
      %p87 = scmp.eq.s32.totalorder %s19, 0
      %p88 = por %p86, %p87
      %s90 = sadd.s32 %s89, 1
      %p93 = scmp.eq.s32.totalorder %s13, 3
      %p94 = scmp.ne.s32.totalorder %s89, %s91
      %p95 = scmp.eq.s32.totalorder %s13, 0
      %p96 = por %p94, %p95
      %p97 = scmp.ne.s32.totalorder %s89, %s91
      %p98 = scmp.eq.s32.totalorder %s18, 3
      %p99 = por %p97, %p98
      %p100 = scmp.ne.s32.totalorder %s91, %s92
      %p101 = scmp.eq.s32.totalorder %s18, 0
      %p102 = por %p100, %p101
      %p103 = scmp.ne.s32.totalorder %s91, %s92
      %p104 = scmp.eq.s32.totalorder %s19, 3
      %p105 = por %p103, %p104
      %p107 = scmp.ne.s32.totalorder %s92, %s106
      %p108 = scmp.eq.s32.totalorder %s19, 0
      %p109 = por %p107, %p108
      %s111 = sadd.s32 %s110, 1
      %p114 = scmp.eq.s32.totalorder %s13, 3
      %p115 = scmp.ne.s32.totalorder %s110, %s112
      %p116 = scmp.eq.s32.totalorder %s13, 0
      %p117 = por %p115, %p116
      %p118 = scmp.ne.s32.totalorder %s110, %s112
      %p119 = scmp.eq.s32.totalorder %s18, 3
      %p120 = por %p118, %p119
      %p121 = scmp.ne.s32.totalorder %s112, %s113
      %p122 = scmp.eq.s32.totalorder %s18, 0
      %p123 = por %p121, %p122
      %p124 = scmp.ne.s32.totalorder %s112, %s113
      %p125 = scmp.eq.s32.totalorder %s19, 3
      %p126 = por %p124, %p125
      %p128 = scmp.ne.s32.totalorder %s113, %s127
      %p129 = scmp.eq.s32.totalorder %s19, 0
      %p130 = por %p128, %p129
      %s131 = ssub.s32 %s20, %s32
      %p132 = scmp.eq.s32.totalorder %s131, 0
      %s134 = sadd.s32 %s133, 1
      %s135 = scalar_select %p132, %s133, %s134
      %p138 = pneg %p132
      %p139 = scmp.eq.s32.totalorder %s13, 3
      %p140 = por %p138, %p139
      %p141 = scmp.ne.s32.totalorder %s133, %s136
      %p142 = scmp.eq.s32.totalorder %s13, 0
      %p143 = por %p141, %p142
      %p144 = scmp.ne.s32.totalorder %s133, %s136
      %p145 = scmp.eq.s32.totalorder %s18, 3
      %p146 = por %p144, %p145
      %p147 = scmp.ne.s32.totalorder %s136, %s137
      %p148 = scmp.eq.s32.totalorder %s18, 0
      %p149 = por %p147, %p148
      %p150 = scmp.ne.s32.totalorder %s136, %s137
      %p151 = scmp.eq.s32.totalorder %s19, 3
      %p152 = por %p150, %p151
      %p154 = scmp.ne.s32.totalorder %s137, %s153
      %p155 = scmp.eq.s32.totalorder %s19, 0
      %p156 = por %p154, %p155
      %p157 = scmp.le.s32.totalorder 1, %s13
      %p158 = scmp.lt.s32.totalorder %s13, 5
      %p159 = pnand %p157, %p158
      %p160 = pneg %p159
      // Predicated region
      $region9: #{tpu_custom_call.1} parent=5 // pred_check
        _
      $region10: #{tpu_custom_call.1} parent=5 // pred_check_branch
        %162 = sbr.rel (%p159) target = $region12
      $region11: #{tpu_custom_call.1} parent=5 // pred_region
        %s163 = ssub.s32 %s13, 1
        // Predicated region
        $region13: #{tpu_custom_call.1} parent=11 // pred_check
          %p164 = pneg %p102
        $region14: #{tpu_custom_call.1} parent=11 // pred_check_branch
          %166 = sbr.rel (%p164) target = $region16
        $region15: #{tpu_custom_call.1} parent=11 // pred_region
          _
        $region16: #{tpu_custom_call.1} parent=11 // pred_fallthru
          _
        // Predicated region
        $region17: #{tpu_custom_call.1} parent=11 // pred_check
          %p167 = pneg %p123
        $region18: #{tpu_custom_call.1} parent=11 // pred_check_branch
          %169 = sbr.rel (%p167) target = $region20
        $region19: #{tpu_custom_call.1} parent=11 // pred_region
          _
        $region20: #{tpu_custom_call.1} parent=11 // pred_fallthru
          _
      $region12: #{tpu_custom_call.1} parent=5 // pred_fallthru
        _
      %p170 = scmp.lt.s32.totalorder %s13, 4
      // Predicated region
      $region21: #{tpu_custom_call.1} parent=5 // pred_check
        %p171 = pneg %p170
      $region22: #{tpu_custom_call.1} parent=5 // pred_check_branch
        %173 = sbr.rel (%p171) target = $region24
      $region23: #{tpu_custom_call.1} parent=5 // pred_region
        // Predicated region
        $region25: #{tpu_custom_call.1} parent=23 // pred_check
          %p174 = pneg %p47
        $region26: #{tpu_custom_call.1} parent=23 // pred_check_branch
          %176 = sbr.rel (%p174) target = $region28
        $region27: #{tpu_custom_call.1} parent=23 // pred_region
          %s177 = sand.u32 %s37, 1
          %s178 = sand.u32 %s37, 1
          %s179 = smul.addr %s178, 128
          %s180 = scalar_lea.vmem [#allocation4], %s179
          %s181 = smul.u32 8, %s20
          %s182 = smul.u32 2, %s21
          %s183 = smul.addr %s181, 4
          %s184 = sadd.s32 %s182, %s183
          %s185 = smul.addr %s184, 8
          %s186 = scalar_lea.vmem %s0, %s185
          // Predicated region
          $region29: #{tpu_custom_call.1} parent=27 // pred_check
            _
          $region30: #{tpu_custom_call.1} parent=27 // pred_check_branch
            %188 = sbr.rel (0) target = $region32
          $region31: #{tpu_custom_call.1} parent=27 // pred_region
            // Predicated region
            $region33: #{tpu_custom_call.1} parent=31 // pred_check
              _
            $region34: #{tpu_custom_call.1} parent=31 // pred_check_branch
              %190 = sbr.rel (0) target = $region36
            $region35: #{tpu_custom_call.1} parent=31 // pred_region
              // Predicated region
              $region48: #{tpu_custom_call.1} parent=35 // pred_check
                _
              $region49: #{tpu_custom_call.1} parent=35 // pred_check_branch
                %235 = sbr.rel (0) target = $region51
              $region50: #{tpu_custom_call.1} parent=35 // pred_region
                loop: start=0, step=1, limit=1
                $region52: #{tpu_custom_call.1} parent=50 // loop_pre_header
                  _
                $region53: #{tpu_custom_call.1} parent=50 // loop_header
                  %s237 = sphi 0, %s241
                  %p238 = scmp.ge.s32.totalorder %s237, 1
                  %s242 = sphi %s186, %s186
                  %s243 = sphi %s180, %s180
                $region54: #{tpu_custom_call.1} parent=50 // loop_header_branch
                  %240 = sbr.rel (%p238) target = $region58
                $region55: #{tpu_custom_call.1} parent=50 // loop_body
                  %v244 = vld [vmem:[%s242] sm:$0xff]
                  %245 = vst [vmem:[%s243] sm:$0xff] %v244
                  %v246 = vld [vmem:[%s242 + $0x8] sm:$0xff]
                  %247 = vst [vmem:[%s243 + $0x8] sm:$0xff] %v246
                  %v248 = vld [vmem:[%s242 + $0x20] sm:$0xff]
                  %249 = vst [vmem:[%s243 + $0x10] sm:$0xff] %v248
                  %v250 = vld [vmem:[%s242 + $0x28] sm:$0xff]
                  %251 = vst [vmem:[%s243 + $0x18] sm:$0xff] %v250
                  %v252 = vld [vmem:[%s242 + $0x40] sm:$0xff]
                  %253 = vst [vmem:[%s243 + $0x20] sm:$0xff] %v252
                  %v254 = vld [vmem:[%s242 + $0x48] sm:$0xff]
                  %255 = vst [vmem:[%s243 + $0x28] sm:$0xff] %v254
                  %v256 = vld [vmem:[%s242 + $0x60] sm:$0xff]
                  %257 = vst [vmem:[%s243 + $0x30] sm:$0xff] %v256
                  %v258 = vld [vmem:[%s242 + $0x68] sm:$0xff]
                  %259 = vst [vmem:[%s243 + $0x38] sm:$0xff] %v258
                  %v260 = vld [vmem:[%s242 + $0x80] sm:$0xff]
                  %261 = vst [vmem:[%s243 + $0x40] sm:$0xff] %v260
                  %v262 = vld [vmem:[%s242 + $0x88] sm:$0xff]
                  %263 = vst [vmem:[%s243 + $0x48] sm:$0xff] %v262
                  %v264 = vld [vmem:[%s242 + $0xa0] sm:$0xff]
                  %265 = vst [vmem:[%s243 + $0x50] sm:$0xff] %v264
                  %v266 = vld [vmem:[%s242 + $0xa8] sm:$0xff]
                  %267 = vst [vmem:[%s243 + $0x58] sm:$0xff] %v266
                  %v268 = vld [vmem:[%s242 + $0xc0] sm:$0xff]
                  %269 = vst [vmem:[%s243 + $0x60] sm:$0xff] %v268
                  %v270 = vld [vmem:[%s242 + $0xc8] sm:$0xff]
                  %271 = vst [vmem:[%s243 + $0x68] sm:$0xff] %v270
                  %v272 = vld [vmem:[%s242 + $0xe0] sm:$0xff]
                  %273 = vst [vmem:[%s243 + $0x70] sm:$0xff] %v272
                  %v274 = vld [vmem:[%s242 + $0xe8] sm:$0xff]
                  %275 = vst [vmem:[%s243 + $0x78] sm:$0xff] %v274
                $region56: #{tpu_custom_call.1} parent=50 // loop_footer
                  %s241 = sadd.s32 1, %s237
                $region57: #{tpu_custom_call.1} parent=50 // loop_footer_branch
                  %236 = sbr.rel target = $region53
                $region58: #{tpu_custom_call.1} parent=50 // loop_exit
                  _
              $region51: #{tpu_custom_call.1} parent=35 // pred_fallthru
                _
              // Predicated region
              $region59: #{tpu_custom_call.1} parent=35 // pred_check
                _
              $region60: #{tpu_custom_call.1} parent=35 // pred_check_branch
                %277 = sbr.rel target = $region62
              $region61: #{tpu_custom_call.1} parent=35 // pred_region
                _
              $region62: #{tpu_custom_call.1} parent=35 // pred_fallthru
                _
            $region36: #{tpu_custom_call.1} parent=31 // pred_fallthru
              _
            // Predicated region
            $region37: #{tpu_custom_call.1} parent=31 // pred_check
              _
            $region38: #{tpu_custom_call.1} parent=31 // pred_check_branch
              %192 = sbr.rel target = $region40
            $region39: #{tpu_custom_call.1} parent=31 // pred_region
              loop: start=0, step=1, limit=1
              $region41: #{tpu_custom_call.1} parent=39 // loop_pre_header
                _
              $region42: #{tpu_custom_call.1} parent=39 // loop_header
                %s195 = sphi 0, %s199
                %p196 = scmp.ge.s32.totalorder %s195, 1
                %s200 = sphi %s186, %s186
                %s201 = sphi %s180, %s180
              $region43: #{tpu_custom_call.1} parent=39 // loop_header_branch
                %198 = sbr.rel (%p196) target = $region47
              $region44: #{tpu_custom_call.1} parent=39 // loop_body
                %v202 = vld [vmem:[%s200] sm:$0xff]
                %203 = vst [vmem:[%s201] sm:$0xff] %v202
                %v204 = vld [vmem:[%s200 + $0x8] sm:$0xff]
                %205 = vst [vmem:[%s201 + $0x8] sm:$0xff] %v204
                %v206 = vld [vmem:[%s200 + $0x20] sm:$0xff]
                %207 = vst [vmem:[%s201 + $0x10] sm:$0xff] %v206
                %v208 = vld [vmem:[%s200 + $0x28] sm:$0xff]
                %209 = vst [vmem:[%s201 + $0x18] sm:$0xff] %v208
                %v210 = vld [vmem:[%s200 + $0x40] sm:$0xff]
                %211 = vst [vmem:[%s201 + $0x20] sm:$0xff] %v210
                %v212 = vld [vmem:[%s200 + $0x48] sm:$0xff]
                %213 = vst [vmem:[%s201 + $0x28] sm:$0xff] %v212
                %v214 = vld [vmem:[%s200 + $0x60] sm:$0xff]
                %215 = vst [vmem:[%s201 + $0x30] sm:$0xff] %v214
                %v216 = vld [vmem:[%s200 + $0x68] sm:$0xff]
                %217 = vst [vmem:[%s201 + $0x38] sm:$0xff] %v216
                %v218 = vld [vmem:[%s200 + $0x80] sm:$0xff]
                %219 = vst [vmem:[%s201 + $0x40] sm:$0xff] %v218
                %v220 = vld [vmem:[%s200 + $0x88] sm:$0xff]
                %221 = vst [vmem:[%s201 + $0x48] sm:$0xff] %v220
                %v222 = vld [vmem:[%s200 + $0xa0] sm:$0xff]
                %223 = vst [vmem:[%s201 + $0x50] sm:$0xff] %v222
                %v224 = vld [vmem:[%s200 + $0xa8] sm:$0xff]
                %225 = vst [vmem:[%s201 + $0x58] sm:$0xff] %v224
                %v226 = vld [vmem:[%s200 + $0xc0] sm:$0xff]
                %227 = vst [vmem:[%s201 + $0x60] sm:$0xff] %v226
                %v228 = vld [vmem:[%s200 + $0xc8] sm:$0xff]
                %229 = vst [vmem:[%s201 + $0x68] sm:$0xff] %v228
                %v230 = vld [vmem:[%s200 + $0xe0] sm:$0xff]
                %231 = vst [vmem:[%s201 + $0x70] sm:$0xff] %v230
                %v232 = vld [vmem:[%s200 + $0xe8] sm:$0xff]
                %233 = vst [vmem:[%s201 + $0x78] sm:$0xff] %v232
              $region45: #{tpu_custom_call.1} parent=39 // loop_footer
                %s199 = sadd.s32 1, %s195
              $region46: #{tpu_custom_call.1} parent=39 // loop_footer_branch
                %194 = sbr.rel target = $region42
              $region47: #{tpu_custom_call.1} parent=39 // loop_exit
                _
            $region40: #{tpu_custom_call.1} parent=31 // pred_fallthru
              _
          $region32: #{tpu_custom_call.1} parent=27 // pred_fallthru
            _
          %278 = vnop
        $region28: #{tpu_custom_call.1} parent=23 // pred_fallthru
          _
        // Predicated region
        $region63: #{tpu_custom_call.1} parent=23 // pred_check
          %p279 = pneg %p75
        $region64: #{tpu_custom_call.1} parent=23 // pred_check_branch
          %281 = sbr.rel (%p279) target = $region66
        $region65: #{tpu_custom_call.1} parent=23 // pred_region
          %s282 = sand.u32 %s65, 1
          %s283 = sand.u32 %s65, 1
          %s284 = smul.addr %s283, 64
          %s285 = scalar_lea.vmem [#allocation5], %s284
          %s286 = smul.u32 8, %s20
          %s287 = smul.u32 2, %s21
          %s288 = smul.addr %s286, 4
          %s289 = sadd.s32 %s287, %s288
          %s290 = smul.addr %s289, 4
          %s291 = scalar_lea.vmem %s1, %s290
          // Predicated region
          $region67: #{tpu_custom_call.1} parent=65 // pred_check
            _
          $region68: #{tpu_custom_call.1} parent=65 // pred_check_branch
            %293 = sbr.rel (0) target = $region70
          $region69: #{tpu_custom_call.1} parent=65 // pred_region
            // Predicated region
            $region71: #{tpu_custom_call.1} parent=69 // pred_check
              _
            $region72: #{tpu_custom_call.1} parent=69 // pred_check_branch
              %295 = sbr.rel target = $region74
            $region73: #{tpu_custom_call.1} parent=69 // pred_region
              // Predicated region
              $region86: #{tpu_custom_call.1} parent=73 // pred_check
                _
              $region87: #{tpu_custom_call.1} parent=73 // pred_check_branch
                %340 = sbr.rel (0) target = $region89
              $region88: #{tpu_custom_call.1} parent=73 // pred_region
                loop: start=0, step=1, limit=1
                $region90: #{tpu_custom_call.1} parent=88 // loop_pre_header
                  _
                $region91: #{tpu_custom_call.1} parent=88 // loop_header
                  %s342 = sphi 0, %s346
                  %p343 = scmp.ge.s32.totalorder %s342, 1
                  %s347 = sphi %s291, %s291
                  %s348 = sphi %s285, %s285
                $region92: #{tpu_custom_call.1} parent=88 // loop_header_branch
                  %345 = sbr.rel (%p343) target = $region96
                $region93: #{tpu_custom_call.1} parent=88 // loop_body
                  _
                $region94: #{tpu_custom_call.1} parent=88 // loop_footer
                  %s346 = sadd.s32 1, %s342
                $region95: #{tpu_custom_call.1} parent=88 // loop_footer_branch
                  %341 = sbr.rel target = $region91
                $region96: #{tpu_custom_call.1} parent=88 // loop_exit
                  _
                loop: start=0, step=1, limit=1
                $region97: #{tpu_custom_call.1} parent=88 // loop_pre_header
                  _
                $region98: #{tpu_custom_call.1} parent=88 // loop_header
                  %s351 = sphi 0, %s355
                  %p352 = scmp.ge.s32.totalorder %s351, 1
                  %s356 = sphi %s291, %s291
                  %s357 = sphi %s285, %s285
                $region99: #{tpu_custom_call.1} parent=88 // loop_header_branch
                  %354 = sbr.rel (%p352) target = $region103
                $region100: #{tpu_custom_call.1} parent=88 // loop_body
                  %v358 = vld [vmem:[%s356] sm:$0xf]
                  %359 = vst [vmem:[%s357] sm:$0xf] %v358
                  %v360 = vld [vmem:[%s356 + $0x4] sm:$0xf]
                  %361 = vst [vmem:[%s357 + $0x4] sm:$0xf] %v360
                  %v362 = vld [vmem:[%s356 + $0x10] sm:$0xf]
                  %363 = vst [vmem:[%s357 + $0x8] sm:$0xf] %v362
                  %v364 = vld [vmem:[%s356 + $0x14] sm:$0xf]
                  %365 = vst [vmem:[%s357 + $0xc] sm:$0xf] %v364
                  %v366 = vld [vmem:[%s356 + $0x20] sm:$0xf]
                  %367 = vst [vmem:[%s357 + $0x10] sm:$0xf] %v366
                  %v368 = vld [vmem:[%s356 + $0x24] sm:$0xf]
                  %369 = vst [vmem:[%s357 + $0x14] sm:$0xf] %v368
                  %v370 = vld [vmem:[%s356 + $0x30] sm:$0xf]
                  %371 = vst [vmem:[%s357 + $0x18] sm:$0xf] %v370
                  %v372 = vld [vmem:[%s356 + $0x34] sm:$0xf]
                  %373 = vst [vmem:[%s357 + $0x1c] sm:$0xf] %v372
                  %v374 = vld [vmem:[%s356 + $0x40] sm:$0xf]
                  %375 = vst [vmem:[%s357 + $0x20] sm:$0xf] %v374
                  %v376 = vld [vmem:[%s356 + $0x44] sm:$0xf]
                  %377 = vst [vmem:[%s357 + $0x24] sm:$0xf] %v376
                  %v378 = vld [vmem:[%s356 + $0x50] sm:$0xf]
                  %379 = vst [vmem:[%s357 + $0x28] sm:$0xf] %v378
                  %v380 = vld [vmem:[%s356 + $0x54] sm:$0xf]
                  %381 = vst [vmem:[%s357 + $0x2c] sm:$0xf] %v380
                  %v382 = vld [vmem:[%s356 + $0x60] sm:$0xf]
                  %383 = vst [vmem:[%s357 + $0x30] sm:$0xf] %v382
                  %v384 = vld [vmem:[%s356 + $0x64] sm:$0xf]
                  %385 = vst [vmem:[%s357 + $0x34] sm:$0xf] %v384
                  %v386 = vld [vmem:[%s356 + $0x70] sm:$0xf]
                  %387 = vst [vmem:[%s357 + $0x38] sm:$0xf] %v386
                  %v388 = vld [vmem:[%s356 + $0x74] sm:$0xf]
                  %389 = vst [vmem:[%s357 + $0x3c] sm:$0xf] %v388
                $region101: #{tpu_custom_call.1} parent=88 // loop_footer
                  %s355 = sadd.s32 1, %s351
                $region102: #{tpu_custom_call.1} parent=88 // loop_footer_branch
                  %350 = sbr.rel target = $region98
                $region103: #{tpu_custom_call.1} parent=88 // loop_exit
                  _
              $region89: #{tpu_custom_call.1} parent=73 // pred_fallthru
                _
            $region74: #{tpu_custom_call.1} parent=69 // pred_fallthru
              _
            // Predicated region
            $region75: #{tpu_custom_call.1} parent=69 // pred_check
              _
            $region76: #{tpu_custom_call.1} parent=69 // pred_check_branch
              %297 = sbr.rel (0) target = $region78
            $region77: #{tpu_custom_call.1} parent=69 // pred_region
              loop: start=0, step=1, limit=1
              $region79: #{tpu_custom_call.1} parent=77 // loop_pre_header
                _
              $region80: #{tpu_custom_call.1} parent=77 // loop_header
                %s300 = sphi 0, %s304
                %p301 = scmp.ge.s32.totalorder %s300, 1
                %s305 = sphi %s291, %s291
                %s306 = sphi %s285, %s285
              $region81: #{tpu_custom_call.1} parent=77 // loop_header_branch
                %303 = sbr.rel (%p301) target = $region85
              $region82: #{tpu_custom_call.1} parent=77 // loop_body
                %v307 = vld [vmem:[%s305] sm:$0xf]
                %308 = vst [vmem:[%s306] sm:$0xf] %v307
                %v309 = vld [vmem:[%s305 + $0x4] sm:$0xf]
                %310 = vst [vmem:[%s306 + $0x4] sm:$0xf] %v309
                %v311 = vld [vmem:[%s305 + $0x10] sm:$0xf]
                %312 = vst [vmem:[%s306 + $0x8] sm:$0xf] %v311
                %v313 = vld [vmem:[%s305 + $0x14] sm:$0xf]
                %314 = vst [vmem:[%s306 + $0xc] sm:$0xf] %v313
                %v315 = vld [vmem:[%s305 + $0x20] sm:$0xf]
                %316 = vst [vmem:[%s306 + $0x10] sm:$0xf] %v315
                %v317 = vld [vmem:[%s305 + $0x24] sm:$0xf]
                %318 = vst [vmem:[%s306 + $0x14] sm:$0xf] %v317
                %v319 = vld [vmem:[%s305 + $0x30] sm:$0xf]
                %320 = vst [vmem:[%s306 + $0x18] sm:$0xf] %v319
                %v321 = vld [vmem:[%s305 + $0x34] sm:$0xf]
                %322 = vst [vmem:[%s306 + $0x1c] sm:$0xf] %v321
                %v323 = vld [vmem:[%s305 + $0x40] sm:$0xf]
                %324 = vst [vmem:[%s306 + $0x20] sm:$0xf] %v323
                %v325 = vld [vmem:[%s305 + $0x44] sm:$0xf]
                %326 = vst [vmem:[%s306 + $0x24] sm:$0xf] %v325
                %v327 = vld [vmem:[%s305 + $0x50] sm:$0xf]
                %328 = vst [vmem:[%s306 + $0x28] sm:$0xf] %v327
                %v329 = vld [vmem:[%s305 + $0x54] sm:$0xf]
                %330 = vst [vmem:[%s306 + $0x2c] sm:$0xf] %v329
                %v331 = vld [vmem:[%s305 + $0x60] sm:$0xf]
                %332 = vst [vmem:[%s306 + $0x30] sm:$0xf] %v331
                %v333 = vld [vmem:[%s305 + $0x64] sm:$0xf]
                %334 = vst [vmem:[%s306 + $0x34] sm:$0xf] %v333
                %v335 = vld [vmem:[%s305 + $0x70] sm:$0xf]
                %336 = vst [vmem:[%s306 + $0x38] sm:$0xf] %v335
                %v337 = vld [vmem:[%s305 + $0x74] sm:$0xf]
                %338 = vst [vmem:[%s306 + $0x3c] sm:$0xf] %v337
              $region83: #{tpu_custom_call.1} parent=77 // loop_footer
                %s304 = sadd.s32 1, %s300
              $region84: #{tpu_custom_call.1} parent=77 // loop_footer_branch
                %299 = sbr.rel target = $region80
              $region85: #{tpu_custom_call.1} parent=77 // loop_exit
                _
            $region78: #{tpu_custom_call.1} parent=69 // pred_fallthru
              _
          $region70: #{tpu_custom_call.1} parent=65 // pred_fallthru
            _
          %390 = vnop
        $region66: #{tpu_custom_call.1} parent=23 // pred_fallthru
          _
      $region24: #{tpu_custom_call.1} parent=5 // pred_fallthru
        _
      %p391 = scmp.le.s32.totalorder 1, %s13
      %p392 = scmp.lt.s32.totalorder %s13, 5
      %p393 = pnand %p391, %p392
      %p394 = pneg %p393
      // Predicated region
      $region104: #{tpu_custom_call.1} parent=5 // pred_check
        _
      $region105: #{tpu_custom_call.1} parent=5 // pred_check_branch
        %396 = sbr.rel (%p393) target = $region107
      $region106: #{tpu_custom_call.1} parent=5 // pred_region
        %s397 = ssub.s32 %s13, 1
        %s398 = sand.u32 %s40, 1
        %s399 = sand.u32 %s40, 1
        %s400 = smul.addr %s399, 128
        %s401 = scalar_lea.vmem [#allocation4], %s400
        // Predicated region
        $region108: #{tpu_custom_call.1} parent=106 // pred_check
          %p402 = pneg %p53
        $region109: #{tpu_custom_call.1} parent=106 // pred_check_branch
          %404 = sbr.rel (%p402) target = $region111
        $region110: #{tpu_custom_call.1} parent=106 // pred_region
          _
        $region111: #{tpu_custom_call.1} parent=106 // pred_fallthru
          _
        %s405 = sand.u32 %s68, 1
        %s406 = sand.u32 %s68, 1
        %s407 = smul.addr %s406, 64
        %s408 = scalar_lea.vmem [#allocation5], %s407
        // Predicated region
        $region112: #{tpu_custom_call.1} parent=106 // pred_check
          %p409 = pneg %p81
        $region113: #{tpu_custom_call.1} parent=106 // pred_check_branch
          %411 = sbr.rel (%p409) target = $region115
        $region114: #{tpu_custom_call.1} parent=106 // pred_region
          _
        $region115: #{tpu_custom_call.1} parent=106 // pred_fallthru
          _
        %s412 = sand.u32 %s40, 1
        %s413 = sand.u32 %s40, 1
        %s414 = smul.addr %s413, 128
        %s415 = scalar_lea.vmem [#allocation4], %s414
        %p416 = pneg %p53
        %p417 = pneg %p50
        %s418 = sand.u32 %s68, 1
        %s419 = sand.u32 %s68, 1
        %s420 = smul.addr %s419, 64
        %s421 = scalar_lea.vmem [#allocation5], %s420
        %p422 = pneg %p81
        %p423 = pneg %p78
        %p424 = pneg %p102
        %p425 = pneg %p99
        %p426 = pneg %p123
        %p427 = pneg %p120
        %p428 = pneg %p149
        %p429 = pneg %p146
        %s430 = sand.u32 %s136, 1
        %s431 = scalar_lea.sflag [#allocation7], %s430
        %s432 = sand.u32 %s136, 1
        %s433 = smul.addr %s432, 8
        %s434 = scalar_lea.vmem [#allocation6], %s433
        %s435 = smul.u32 8, %s22
        %s436 = smul.u32 2, %s23
        %s437 = smul.u32 8, %s22
        %s438 = smul.u32 2, %s23
        %p439 = scmp.eq.s32.totalorder %s23, 0
        // Predicated region
        $region116: #{tpu_custom_call.1} parent=106 // pred_check
          %p440 = pneg %p439
        $region117: #{tpu_custom_call.1} parent=106 // pred_check_branch
          %442 = sbr.rel (%p440) target = $region119
        $region118: #{tpu_custom_call.1} parent=106 // pred_region
          %vm443 = vcmask 523264
          %444 = vst.msk [vmem:[#allocation2] sm:$0xff] %vm443, 0.0
          %vm445 = vcmask 7168
          %446 = vst.msk [vmem:[#allocation3] sm:$0xff] %vm445, 0.0
        $region119: #{tpu_custom_call.1} parent=106 // pred_fallthru
          _
        %v447 = vld [vmem:[%s401] sm:$0xff]
        %v448 = vld [vmem:[%s401 + $0x8] sm:$0xff]
        %v449 = vld [vmem:[%s401 + $0x10] sm:$0xff]
        %v450 = vld [vmem:[%s401 + $0x18] sm:$0xff]
        %v451 = vld [vmem:[%s401 + $0x20] sm:$0xff]
        %v452 = vld [vmem:[%s401 + $0x28] sm:$0xff]
        %v453 = vld [vmem:[%s401 + $0x30] sm:$0xff]
        %v454 = vld [vmem:[%s401 + $0x38] sm:$0xff]
        %v455 = vld [vmem:[%s401 + $0x40] sm:$0xff]
        %v456 = vld [vmem:[%s401 + $0x48] sm:$0xff]
        %v457 = vld [vmem:[%s401 + $0x50] sm:$0xff]
        %v458 = vld [vmem:[%s401 + $0x58] sm:$0xff]
        %v459 = vld [vmem:[%s401 + $0x60] sm:$0xff]
        %v460 = vld [vmem:[%s401 + $0x68] sm:$0xff]
        %v461 = vld [vmem:[%s401 + $0x70] sm:$0xff]
        %v462 = vld [vmem:[%s401 + $0x78] sm:$0xff]
        %v463 = vld [vmem:[%s408] sm:$0xf]
        %v464 = vld [vmem:[%s408 + $0x4] sm:$0xf]
        %v465 = vld [vmem:[%s408 + $0x8] sm:$0xf]
        %v466 = vld [vmem:[%s408 + $0xc] sm:$0xf]
        %v467 = vld [vmem:[%s408 + $0x10] sm:$0xf]
        %v468 = vld [vmem:[%s408 + $0x14] sm:$0xf]
        %v469 = vld [vmem:[%s408 + $0x18] sm:$0xf]
        %v470 = vld [vmem:[%s408 + $0x1c] sm:$0xf]
        %v471 = vld [vmem:[%s408 + $0x20] sm:$0xf]
        %v472 = vld [vmem:[%s408 + $0x24] sm:$0xf]
        %v473 = vld [vmem:[%s408 + $0x28] sm:$0xf]
        %v474 = vld [vmem:[%s408 + $0x2c] sm:$0xf]
        %v475 = vld [vmem:[%s408 + $0x30] sm:$0xf]
        %v476 = vld [vmem:[%s408 + $0x34] sm:$0xf]
        %v477 = vld [vmem:[%s408 + $0x38] sm:$0xf]
        %v478 = vld [vmem:[%s408 + $0x3c] sm:$0xf]
        %v479 = vunpack.c.l.bf16 %v463
        %v480 = vunpack.c.l.bf16 %v464
        %v481 = vunpack.c.l.bf16 %v465
        %v482 = vunpack.c.l.bf16 %v466
        %v483 = vunpack.c.l.bf16 %v467
        %v484 = vunpack.c.l.bf16 %v468
        %v485 = vunpack.c.l.bf16 %v469
        %v486 = vunpack.c.l.bf16 %v470
        %v487 = vunpack.c.l.bf16 %v471
        %v488 = vunpack.c.l.bf16 %v472
        %v489 = vunpack.c.l.bf16 %v473
        %v490 = vunpack.c.l.bf16 %v474
        %v491 = vunpack.c.l.bf16 %v475
        %v492 = vunpack.c.l.bf16 %v476
        %v493 = vunpack.c.l.bf16 %v477
        %v494 = vunpack.c.l.bf16 %v478
        %v495 = vld [vmem:[#allocation2] sm:$0xff]
        %497 = vset.pattern.permute.xlu0 0
        %498 = vperm.xlu0 %497, %v447
        %v499 = vpop.permute.xlu0 %498
        %502 = vset.pattern.permute.xlu0 0
        %503 = vperm.xlu0 %502, %v448
        %v504 = vpop.permute.xlu0 %503
        %507 = vset.pattern.permute.xlu0 0
        %508 = vperm.xlu0 %507, %v449
        %v509 = vpop.permute.xlu0 %508
        %512 = vset.pattern.permute.xlu0 0
        %513 = vperm.xlu0 %512, %v450
        %v514 = vpop.permute.xlu0 %513
        %517 = vset.pattern.permute.xlu0 0
        %518 = vperm.xlu0 %517, %v451
        %v519 = vpop.permute.xlu0 %518
        %522 = vset.pattern.permute.xlu0 0
        %523 = vperm.xlu0 %522, %v452
        %v524 = vpop.permute.xlu0 %523
        %527 = vset.pattern.permute.xlu0 0
        %528 = vperm.xlu0 %527, %v453
        %v529 = vpop.permute.xlu0 %528
        %532 = vset.pattern.permute.xlu0 0
        %533 = vperm.xlu0 %532, %v454
        %v534 = vpop.permute.xlu0 %533
        %537 = vset.pattern.permute.xlu0 0
        %538 = vperm.xlu0 %537, %v455
        %v539 = vpop.permute.xlu0 %538
        %542 = vset.pattern.permute.xlu0 0
        %543 = vperm.xlu0 %542, %v456
        %v544 = vpop.permute.xlu0 %543
        %547 = vset.pattern.permute.xlu0 0
        %548 = vperm.xlu0 %547, %v457
        %v549 = vpop.permute.xlu0 %548
        %552 = vset.pattern.permute.xlu0 0
        %553 = vperm.xlu0 %552, %v458
        %v554 = vpop.permute.xlu0 %553
        %557 = vset.pattern.permute.xlu0 0
        %558 = vperm.xlu0 %557, %v459
        %v559 = vpop.permute.xlu0 %558
        %562 = vset.pattern.permute.xlu0 0
        %563 = vperm.xlu0 %562, %v460
        %v564 = vpop.permute.xlu0 %563
        %567 = vset.pattern.permute.xlu0 0
        %568 = vperm.xlu0 %567, %v461
        %v569 = vpop.permute.xlu0 %568
        %572 = vset.pattern.permute.xlu0 0
        %573 = vperm.xlu0 %572, %v462
        %v574 = vpop.permute.xlu0 %573
        %v576 = vmul.f32 %v479, %v499
        %v577 = vmul.f32 %v480, %v504
        %v578 = vmul.f32 %v481, %v509
        %v579 = vmul.f32 %v482, %v514
        %v580 = vmul.f32 %v483, %v519
        %v581 = vmul.f32 %v484, %v524
        %v582 = vmul.f32 %v485, %v529
        %v583 = vmul.f32 %v486, %v534
        %v584 = vmul.f32 %v487, %v539
        %v585 = vmul.f32 %v488, %v544
        %v586 = vmul.f32 %v489, %v549
        %v587 = vmul.f32 %v490, %v554
        %v588 = vmul.f32 %v491, %v559
        %v589 = vmul.f32 %v492, %v564
        %v590 = vmul.f32 %v493, %v569
        %v591 = vmul.f32 %v494, %v574
        %vm592 = vcmask 523264
        %v593 = vsel %vm592, %v576, 0.0
        %v594 = vsel %vm592, %v577, 0.0
        %v595 = vadd.f32 %v593, %v594
        %v596 = vrot.slane %v595, 4
        %v597 = vadd.f32 %v595, %v596
        %v598 = vrot.slane %v597, 2
        %v599 = vadd.f32 %v597, %v598
        %v600 = vrot.slane %v599, 1
        %v601 = vadd.f32 %v599, %v600
        %v602 = vsel %vm592, %v578, 0.0
        %v603 = vsel %vm592, %v579, 0.0
        %v604 = vadd.f32 %v602, %v603
        %v605 = vrot.slane %v604, 4
        %v606 = vadd.f32 %v604, %v605
        %v607 = vrot.slane %v606, 2
        %v608 = vadd.f32 %v606, %v607
        %v609 = vrot.slane %v608, 1
        %v610 = vadd.f32 %v608, %v609
        %v611 = vsel %vm592, %v580, 0.0
        %v612 = vsel %vm592, %v581, 0.0
        %v613 = vadd.f32 %v611, %v612
        %v614 = vrot.slane %v613, 4
        %v615 = vadd.f32 %v613, %v614
        %v616 = vrot.slane %v615, 2
        %v617 = vadd.f32 %v615, %v616
        %v618 = vrot.slane %v617, 1
        %v619 = vadd.f32 %v617, %v618
        %v620 = vsel %vm592, %v582, 0.0
        %v621 = vsel %vm592, %v583, 0.0
        %v622 = vadd.f32 %v620, %v621
        %v623 = vrot.slane %v622, 4
        %v624 = vadd.f32 %v622, %v623
        %v625 = vrot.slane %v624, 2
        %v626 = vadd.f32 %v624, %v625
        %v627 = vrot.slane %v626, 1
        %v628 = vadd.f32 %v626, %v627
        %v629 = vsel %vm592, %v584, 0.0
        %v630 = vsel %vm592, %v585, 0.0
        %v631 = vadd.f32 %v629, %v630
        %v632 = vrot.slane %v631, 4
        %v633 = vadd.f32 %v631, %v632
        %v634 = vrot.slane %v633, 2
        %v635 = vadd.f32 %v633, %v634
        %v636 = vrot.slane %v635, 1
        %v637 = vadd.f32 %v635, %v636
        %v638 = vsel %vm592, %v586, 0.0
        %v639 = vsel %vm592, %v587, 0.0
        %v640 = vadd.f32 %v638, %v639
        %v641 = vrot.slane %v640, 4
        %v642 = vadd.f32 %v640, %v641
        %v643 = vrot.slane %v642, 2
        %v644 = vadd.f32 %v642, %v643
        %v645 = vrot.slane %v644, 1
        %v646 = vadd.f32 %v644, %v645
        %v647 = vsel %vm592, %v588, 0.0
        %v648 = vsel %vm592, %v589, 0.0
        %v649 = vadd.f32 %v647, %v648
        %v650 = vrot.slane %v649, 4
        %v651 = vadd.f32 %v649, %v650
        %v652 = vrot.slane %v651, 2
        %v653 = vadd.f32 %v651, %v652
        %v654 = vrot.slane %v653, 1
        %v655 = vadd.f32 %v653, %v654
        %v656 = vsel %vm592, %v590, 0.0
        %v657 = vsel %vm592, %v591, 0.0
        %v658 = vadd.f32 %v656, %v657
        %v659 = vrot.slane %v658, 4
        %v660 = vadd.f32 %v658, %v659
        %v661 = vrot.slane %v660, 2
        %v662 = vadd.f32 %v660, %v661
        %v663 = vrot.slane %v662, 1
        %v664 = vadd.f32 %v662, %v663
        %vm673 = vcmask 1041409
        %v674 = vsel %vm673, %v610, %v601
        %vm675 = vcmask 1042434
        %v676 = vsel %vm675, %v619, %v674
        %vm677 = vcmask 1043459
        %v678 = vsel %vm677, %v628, %v676
        %vm679 = vcmask 1044484
        %v680 = vsel %vm679, %v637, %v678
        %vm681 = vcmask 1045509
        %v682 = vsel %vm681, %v646, %v680
        %vm683 = vcmask 1046534
        %v684 = vsel %vm683, %v655, %v682
        %vm685 = vcmask 1047559
        %v686 = vsel %vm685, %v664, %v684
        %v688 = vadd.f32 %v495, %v686
        %689 = vst.msk [vmem:[#allocation2] sm:$0xff] %vm592, %v688
        %v690 = vld [vmem:[#allocation3] sm:$0xff]
        %vm691 = vcmask 7168
        %v692 = vsel %vm691, %v447, 0.0
        %v693 = vsel %vm691, %v448, 0.0
        %v694 = vadd.f32 %v692, %v693
        %v695 = vrot.slane %v694, 4
        %v696 = vadd.f32 %v694, %v695
        %v697 = vrot.slane %v696, 2
        %v698 = vadd.f32 %v696, %v697
        %v699 = vrot.slane %v698, 1
        %v700 = vadd.f32 %v698, %v699
        %v701 = vsel %vm691, %v449, 0.0
        %v702 = vsel %vm691, %v450, 0.0
        %v703 = vadd.f32 %v701, %v702
        %v704 = vrot.slane %v703, 4
        %v705 = vadd.f32 %v703, %v704
        %v706 = vrot.slane %v705, 2
        %v707 = vadd.f32 %v705, %v706
        %v708 = vrot.slane %v707, 1
        %v709 = vadd.f32 %v707, %v708
        %v710 = vsel %vm691, %v451, 0.0
        %v711 = vsel %vm691, %v452, 0.0
        %v712 = vadd.f32 %v710, %v711
        %v713 = vrot.slane %v712, 4
        %v714 = vadd.f32 %v712, %v713
        %v715 = vrot.slane %v714, 2
        %v716 = vadd.f32 %v714, %v715
        %v717 = vrot.slane %v716, 1
        %v718 = vadd.f32 %v716, %v717
        %v719 = vsel %vm691, %v453, 0.0
        %v720 = vsel %vm691, %v454, 0.0
        %v721 = vadd.f32 %v719, %v720
        %v722 = vrot.slane %v721, 4
        %v723 = vadd.f32 %v721, %v722
        %v724 = vrot.slane %v723, 2
        %v725 = vadd.f32 %v723, %v724
        %v726 = vrot.slane %v725, 1
        %v727 = vadd.f32 %v725, %v726
        %v728 = vsel %vm691, %v455, 0.0
        %v729 = vsel %vm691, %v456, 0.0
        %v730 = vadd.f32 %v728, %v729
        %v731 = vrot.slane %v730, 4
        %v732 = vadd.f32 %v730, %v731
        %v733 = vrot.slane %v732, 2
        %v734 = vadd.f32 %v732, %v733
        %v735 = vrot.slane %v734, 1
        %v736 = vadd.f32 %v734, %v735
        %v737 = vsel %vm691, %v457, 0.0
        %v738 = vsel %vm691, %v458, 0.0
        %v739 = vadd.f32 %v737, %v738
        %v740 = vrot.slane %v739, 4
        %v741 = vadd.f32 %v739, %v740
        %v742 = vrot.slane %v741, 2
        %v743 = vadd.f32 %v741, %v742
        %v744 = vrot.slane %v743, 1
        %v745 = vadd.f32 %v743, %v744
        %v746 = vsel %vm691, %v459, 0.0
        %v747 = vsel %vm691, %v460, 0.0
        %v748 = vadd.f32 %v746, %v747
        %v749 = vrot.slane %v748, 4
        %v750 = vadd.f32 %v748, %v749
        %v751 = vrot.slane %v750, 2
        %v752 = vadd.f32 %v750, %v751
        %v753 = vrot.slane %v752, 1
        %v754 = vadd.f32 %v752, %v753
        %v755 = vsel %vm691, %v461, 0.0
        %v756 = vsel %vm691, %v462, 0.0
        %v757 = vadd.f32 %v755, %v756
        %v758 = vrot.slane %v757, 4
        %v759 = vadd.f32 %v757, %v758
        %v760 = vrot.slane %v759, 2
        %v761 = vadd.f32 %v759, %v760
        %v762 = vrot.slane %v761, 1
        %v763 = vadd.f32 %v761, %v762
        %v772 = vsel %vm673, %v709, %v700
        %v773 = vsel %vm675, %v718, %v772
        %v774 = vsel %vm677, %v727, %v773
        %v775 = vsel %vm679, %v736, %v774
        %v776 = vsel %vm681, %v745, %v775
        %v777 = vsel %vm683, %v754, %v776
        %v778 = vsel %vm685, %v763, %v777
        %v780 = vadd.f32 %v690, %v778
        %781 = vst.msk [vmem:[#allocation3] sm:$0xff] %vm691, %v780
        %p782 = scmp.eq.s32.totalorder %s23, 1
        // Predicated region
        $region120: #{tpu_custom_call.1} parent=106 // pred_check
          %p783 = pneg %p782
        $region121: #{tpu_custom_call.1} parent=106 // pred_check_branch
          %785 = sbr.rel (%p783) target = $region123
        $region122: #{tpu_custom_call.1} parent=106 // pred_region
          %v786 = vld [vmem:[#allocation2] sm:$0xff]
          %v787 = vld [vmem:[#allocation3] sm:$0xff]
          %v788 = vadd.f32 %v787, 1e-10
          %790 = vset.pattern.permute.xlu0 0
          %791 = vperm.xlu0 %790, %v788
          %v792 = vpop.permute.xlu0 %791
          %v794 = vrcp.pop %v792
          %v795 = vmul.f32 %v786, %v794
          %v796 = vld [vmem:[%s2] sm:$0xff]
          %v797 = vld [vmem:[%s2 + $0x8] sm:$0xff]
          %v798 = vld [vmem:[%s2 + $0x10] sm:$0xff]
          %v799 = vld [vmem:[%s2 + $0x18] sm:$0xff]
          %v800 = vld [vmem:[%s2 + $0x20] sm:$0xff]
          %v801 = vld [vmem:[%s2 + $0x28] sm:$0xff]
          %v802 = vld [vmem:[%s2 + $0x30] sm:$0xff]
          %v803 = vld [vmem:[%s2 + $0x38] sm:$0xff]
          %v804 = vld [vmem:[%s3] sm:$0x1]
          %v806 = vlaneseq
          %v807 = vshrl.u32 %v806, 7
          %v808 = vsub.s32 0, %v807
          %v809 = vrot.slane %v804, %v808
          %v812 = vsel %vm592, %v795, 0
          %814 = vmatprep.subr.mxu0 0.0
          %815 = vmatpush1.msra.mxu0 %v796
          %816 = vmatprep.subr.mxu0 0.0
          %817 = vmatpush1.msra.mxu0 %v797
          %818 = vmatprep.subr.mxu0 0.0
          %819 = vmatpush1.msra.mxu0 %v798
          %820 = vmatprep.subr.mxu0 0.0
          %821 = vmatpush1.msra.mxu0 %v799
          %822 = vmatprep.subr.mxu0 0.0
          %823 = vmatpush1.msra.mxu0 %v800
          %824 = vmatprep.subr.mxu0 0.0
          %825 = vmatpush1.msra.mxu0 %v801
          %826 = vmatprep.subr.mxu0 0.0
          %827 = vmatpush1.msra.mxu0 %v802
          %828 = vmatprep.subr.mxu0 0.0
          %829 = vmatpush1.msra.mxu0 %v803
          %830 = vmatprep.subr.mxu0 0.0
          %831 = vmatpush1.msra.mxu0 0.0
          %832 = vmatprep.subr.mxu0 0.0
          %833 = vmatpush1.msra.mxu0 0.0
          %834 = vmatprep.subr.mxu0 0.0
          %835 = vmatpush1.msra.mxu0 0.0
          %836 = vmatprep.subr.mxu0 0.0
          %837 = vmatpush1.msra.mxu0 0.0
          %838 = vmatprep.subr.mxu0 0.0
          %839 = vmatpush1.msra.mxu0 0.0
          %840 = vmatprep.subr.mxu0 0.0
          %841 = vmatpush1.msra.mxu0 0.0
          %842 = vmatprep.subr.mxu0 0.0
          %843 = vmatpush1.msra.mxu0 0.0
          %844 = vmatprep.subr.mxu0 0.0
          %845 = vmatpush1.msra.mxu0 0.0
          %846 = vmatprep.subr.mxu0 0.0
          %847 = vmatpush1.msra.mxu0 0.0
          %848 = vmatprep.subr.mxu0 0.0
          %849 = vmatpush1.msra.mxu0 0.0
          %850 = vmatprep.subr.mxu0 0.0
          %851 = vmatpush1.msra.mxu0 0.0
          %852 = vmatprep.subr.mxu0 0.0
          %853 = vmatpush1.msra.mxu0 0.0
          %854 = vmatprep.subr.mxu0 0.0
          %855 = vmatpush1.msra.mxu0 0.0
          %856 = vmatprep.subr.mxu0 0.0
          %857 = vmatpush1.msra.mxu0 0.0
          %858 = vmatprep.subr.mxu0 0.0
          %859 = vmatpush1.msra.mxu0 0.0
          %860 = vmatprep.subr.mxu0 0.0
          %861 = vmatpush1.msra.mxu0 0.0
          %862 = vmatprep.subr.mxu0 0.0
          %863 = vmatpush1.msra.mxu0 0.0
          %864 = vmatprep.subr.mxu0 0.0
          %865 = vmatpush1.msra.mxu0 0.0
          %866 = vmatprep.subr.mxu0 0.0
          %867 = vmatpush1.msra.mxu0 0.0
          %868 = vmatprep.subr.mxu0 0.0
          %869 = vmatpush1.msra.mxu0 0.0
          %870 = vmatprep.subr.mxu0 0.0
          %871 = vmatpush1.msra.mxu0 0.0
          %872 = vmatprep.subr.mxu0 0.0
          %873 = vmatpush1.msra.mxu0 0.0
          %874 = vmatprep.subr.mxu0 0.0
          %875 = vmatpush1.msra.mxu0 0.0
          %876 = vmatprep.subr.mxu0 0.0
          %877 = vmatpush1.msra.mxu0 0.0
          %878 = vmatprep.mubr.f32.mxu0 0.0
          %879 = vmatmul.mubr.f32.gmra.mrb[0].mxu0 %v812
          %v880 = vpop.f32.mrb[0].mxu0
          %v881 = vadd.f32 %v809, %v880
          %v882 = vpop.f32.mrb[0].mxu0
          %883 = vdwg.mxu0
          %884 = vmax.xlane.f32.xlu0 %v881
          %v885 = vpop.xlane.xlu0 %884
          %v886 = vsub.f32 %v881, %v885
          %v887 = vmul.f32 %v886, 1.442695
          %v888 = vpow.pop %v887
          %889 = vadd.xlane.f32.xlu0 %v888
          %v890 = vpop.xlane.xlu0 %889
          %v891 = vlog2.pop %v890
          %v892 = vmul.f32 %v891, 0.6931472
          %v893 = vadd.f32 %v885, %v892
          %v894 = vsub.f32 %v881, %v893
          %895 = vst [vmem:[%s434] sm:$0xff] %v894
        $region123: #{tpu_custom_call.1} parent=106 // pred_fallthru
          _
        %s896 = sand.u32 %s136, 1
        %s897 = scalar_lea.sflag [#allocation7], %s896
        %s898 = sand.u32 %s136, 1
        %s899 = smul.addr %s898, 8
        %s900 = scalar_lea.vmem [#allocation6], %s899
        // Predicated region
        $region124: #{tpu_custom_call.1} parent=106 // pred_check
          %p901 = pneg %p146
        $region125: #{tpu_custom_call.1} parent=106 // pred_check_branch
          %903 = sbr.rel (%p901) target = $region127
        $region126: #{tpu_custom_call.1} parent=106 // pred_region
          %s905 = ssub.s32 128, 128
          %906 = vsyncadd %s897, %s905
          %s907 = smul.addr %s22, 128
          %s908 = scalar_lea.hbm %s4, %s907
          %s910 = sshll.u32 %s900, 4
          %s911 = int_to_ptr.vmem [resolvable:$true] %s910
          %913 = dma.vmem_to_hbm [thread:$0]  %s911, 128, %s908, %s897
        $region127: #{tpu_custom_call.1} parent=106 // pred_fallthru
          _
      $region107: #{tpu_custom_call.1} parent=5 // pred_fallthru
        _
      %p914 = scmp.le.s32.totalorder 2, %s13
      // Predicated region
      $region128: #{tpu_custom_call.1} parent=5 // pred_check
        %p915 = pneg %p914
      $region129: #{tpu_custom_call.1} parent=5 // pred_check_branch
        %917 = sbr.rel (%p915) target = $region131
      $region130: #{tpu_custom_call.1} parent=5 // pred_region
        %s918 = ssub.s32 %s13, 2
        // Predicated region
        $region132: #{tpu_custom_call.1} parent=130 // pred_check
          %p919 = pneg %p152
        $region133: #{tpu_custom_call.1} parent=130 // pred_check_branch
          %921 = sbr.rel (%p919) target = $region135
        $region134: #{tpu_custom_call.1} parent=130 // pred_region
          %s922 = sand.u32 %s137, 1
          %s923 = scalar_lea.sflag [#allocation7], %s922
          %s924 = sand.u32 %s137, 1
          %s925 = smul.addr %s924, 8
          %s926 = scalar_lea.vmem [#allocation6], %s925
          %927 = dma.done %s923, 128
        $region135: #{tpu_custom_call.1} parent=130 // pred_fallthru
          _
      $region131: #{tpu_custom_call.1} parent=5 // pred_fallthru
        _
    $region6: #{tpu_custom_call.1} parent=1 // loop_footer
      %s17 = sadd.s32 1, %s13
    $region7: #{tpu_custom_call.1} parent=1 // loop_footer_branch
      %12 = sbr.rel target = $region3
    $region8: #{tpu_custom_call.1} parent=1 // loop_exit
      _
    %928 = vsyncpa [#allocation7], 1
    %s929 = scalar_lea.sflag [#allocation7], 1
    %930 = vsyncpa %s929, 1

</llo_original>
